<compile_context>
chip_gen: v6e
topology: v6e:2x2x1
jax: 0.10.0
libtpu: 0.0.40
codegen_flags: <defaults>
</compile_context>

<pallas_src>
import math

import numpy as np
import jax
import jax.numpy as jnp
from jax import lax
from jax.experimental import pallas as pl
from jax.experimental.pallas import tpu as pltpu

NEG_SLOPE = 0.01  # torch.nn.LeakyReLU default negative_slope


def _round_up(x, m):
    return (x + m - 1) // m * m


def _make_kernel(k, l_chunk, num_chunks, b_blk, unroll):
    def kernel(cat_ref, w_ref, b_ref, o_ref):
        # Grid-step-invariant operands, hoisted out of the loop.
        bv = b_ref[...]                          # (out_ch_p, 1) f32
        taps = [w_ref[t] for t in range(k)]      # k x (out_ch_p, in_ch_p)

        def body(idx, carry):
            if num_chunks == 1:
                bi = idx                         # fully static lane indexing
                start = 0
            else:
                bi = idx // num_chunks
                c = idx - bi * num_chunks
                start = pl.multiple_of(c * l_chunk, 128)

            # Window = chunk + (k-1) halo, loaded once; per-tap slices are
            # static-offset value slices (lane shifts on the XLU slot).
            win = cat_ref[bi, :, pl.ds(start, l_chunk + k - 1)]

            acc = jnp.dot(taps[0], win[:, 0:l_chunk],
                          preferred_element_type=jnp.float32)
            for t in range(1, k):
                acc = acc + jnp.dot(taps[t], win[:, t:t + l_chunk],
                                    preferred_element_type=jnp.float32)
            acc = acc + bv
            res = jnp.where(acc >= 0, acc, NEG_SLOPE * acc)   # LeakyReLU(0.01)
            o_ref[bi, :, pl.ds(start, l_chunk)] = res.astype(o_ref.dtype)
            return carry

        lax.fori_loop(0, b_blk * num_chunks, body, 0, unroll=unroll)

    return kernel


def upsampling_forward(x, x_back, weight, bias, *,
                       compute_dtype=jnp.bfloat16, out_dtype=None):
    """Pallas implementation of WaveUNet UpSampling.forward (NCW layout)."""
    n, c1, l = x.shape
    n2, c2, l_back = x_back.shape
    assert n == n2
    out_ch, in_ch, k = weight.shape
    assert in_ch == c1 + c2
    l_up = 2 * l
    assert l_back >= l_up, "x_back must be at least as long as the upsampled x"
    out_dtype = compute_dtype if out_dtype is None else out_dtype

    conv_pad = 2                                  # module hard-codes padding=2
    l_out = l_back + 2 * conv_pad - k + 1         # Conv1d output length
    assert l_out >= 1

    # ---- padded / aligned geometry ----
    f32 = jnp.float32
    isz = jnp.dtype(compute_dtype).itemsize
    osz = jnp.dtype(out_dtype).itemsize
    in_sub = 8 * (4 // isz)                       # sublane multiple for compute dtype
    out_sub = 8 * (4 // osz)
    in_ch_p = _round_up(in_ch, in_sub)
    out_ch_p = _round_up(out_ch, out_sub)
    l_out_p = _round_up(l_out, 128)               # lane-dense output stores
    l_slab = l_out_p + k - 1                      # conv-input width incl. halo
    l_chunk = math.gcd(l_out_p, 512)              # in-kernel length chunk (vreg-resident acc)
    num_chunks = l_out_p // l_chunk

    # Batch block: respect a conservative VMEM budget (v7x-safe) and keep >=2
    # grid steps so both v7x TensorCores get work.
    def _blk_bytes(bb):
        return (2 * bb * in_ch_p * l_slab * isz          # input block, double-buffered
                + 2 * bb * out_ch_p * l_out_p * osz      # output block, double-buffered
                + 2 * (k * out_ch_p * in_ch_p * isz      # conv taps
                       + out_ch_p * 4))                  # bias

    vmem_budget = 40 << 20
    b_blk = min(n, 8)
    while b_blk > 1 and _blk_bytes(b_blk) > vmem_budget:
        b_blk //= 2
    while b_blk > 1 and _round_up(n, b_blk) // b_blk < 2:
        b_blk //= 2
    n_pad = _round_up(n, b_blk)
    vmem_limit = int(min(max(_blk_bytes(b_blk) + (2 << 20), 16 << 20), 48 << 20))

    # ---- exact integer interpolation geometry (align_corners=True, scale=2) ----
    j = np.arange(l_up, dtype=np.int64)
    num = j * (l - 1)
    den = max(l_up - 1, 1)
    i0 = (num // den).astype(np.int32)
    i1 = np.minimum(i0 + 1, l - 1).astype(np.int32)
    frac = ((num % den).astype(np.float64) / float(den)).astype(np.float32)

    # ---- wrapper preprocessing: one pre-blended, fused conv-input slab ----
    x32 = jnp.asarray(x, f32)
    x_lo = jnp.take(x32, jnp.asarray(i0), axis=2)
    x_hi = jnp.take(x32, jnp.asarray(i1), axis=2)
    up = (x_lo + jnp.asarray(frac)[None, None, :] * (x_hi - x_lo)).astype(compute_dtype)
    up = jnp.pad(up, ((0, 0), (0, 0), (0, l_back - l_up)))          # F.pad(x, (0, diff))
    cat = jnp.concatenate([up, jnp.asarray(x_back, compute_dtype)], axis=1)
    # One pad: batch alignment, channel sublane-pad, conv padding + lane alignment.
    cat = jnp.pad(cat, ((0, n_pad - n),
                        (0, in_ch_p - in_ch),
                        (conv_pad, l_slab - conv_pad - l_back)))

    # Conv weight as (K, out_ch_p, in_ch_p) taps; zero-padded channels.
    w_t = jnp.transpose(jnp.asarray(weight, f32), (2, 0, 1))        # (k, out_ch, in_ch)
    w_t = jnp.pad(w_t, ((0, 0), (0, out_ch_p - out_ch),
                        (0, in_ch_p - in_ch))).astype(compute_dtype)
    b2 = jnp.pad(jnp.asarray(bias, f32), (0, out_ch_p - out_ch)).reshape(out_ch_p, 1)

    unroll = (b_blk * num_chunks) <= 8
    kernel = _make_kernel(k, l_chunk, num_chunks, b_blk, unroll)

    out_p = pl.pallas_call(
        kernel,
        out_shape=jax.ShapeDtypeStruct((n_pad, out_ch_p, l_out_p), out_dtype),
        grid_spec=pltpu.PrefetchScalarGridSpec(
            num_scalar_prefetch=0,
            grid=(n_pad // b_blk,),
            in_specs=[
                pl.BlockSpec((b_blk, in_ch_p, l_slab), lambda b: (b, 0, 0)),
                pl.BlockSpec((k, out_ch_p, in_ch_p), lambda b: (0, 0, 0)),
                pl.BlockSpec((out_ch_p, 1), lambda b: (0, 0)),
            ],
            out_specs=pl.BlockSpec((b_blk, out_ch_p, l_out_p), lambda b: (b, 0, 0)),
        ),
        compiler_params=pltpu.CompilerParams(
            dimension_semantics=("parallel",),
            vmem_limit_bytes=vmem_limit,
        ),
    )(cat, w_t, b2)

    # Crop batch / channel / length alignment padding.
    return out_p[:n, :out_ch, :l_out]


def reference(x, x_back, weight, bias):
    """Pure-JAX f32 reference matching the PyTorch module semantics."""
    n, c1, l = x.shape
    l_up = 2 * l
    l_back = x_back.shape[-1]
    j = jnp.arange(l_up)
    src = j * (l - 1) / (l_up - 1)
    i0 = jnp.floor(src).astype(jnp.int32)
    i1 = jnp.minimum(i0 + 1, l - 1)
    w1 = src - i0
    up = x[..., i0] * (1.0 - w1) + x[..., i1] * w1                 # Upsample(linear, align_corners=True)
    up = jnp.pad(up, ((0, 0), (0, 0), (0, l_back - l_up)))         # F.pad(x, (0, diff))
    cat = jnp.concatenate([up, x_back], axis=1)                    # torch.cat axis=1
    out = jax.lax.conv_general_dilated(
        cat, weight, window_strides=(1,), padding=[(2, 2)],
        dimension_numbers=('NCH', 'OIH', 'NCH'))
    out = out + bias[None, :, None]
    return jnp.where(out >= 0, out, NEG_SLOPE * out)               # LeakyReLU


if __name__ == "__main__":
    key = jax.random.PRNGKey(0)
    kx, kxb, kw, kb = jax.random.split(key, 4)

    # Small shapes consistent with the module: in_ch = C1 + C2.
    N, C1, C2, L, L_BACK, K, OUT_CH = 2, 4, 4, 8, 18, 5, 8
    IN_CH = C1 + C2

    x = jax.random.normal(kx, (N, C1, L), jnp.float32)
    x_back = jax.random.normal(kxb, (N, C2, L_BACK), jnp.float32)
    weight = jax.random.normal(kw, (OUT_CH, IN_CH, K), jnp.float32) * 0.1
    bias = jax.random.normal(kb, (OUT_CH,), jnp.float32) * 0.1

    out = upsampling_forward(x, x_back, weight, bias)
    out = jax.block_until_ready(out)

    ref = reference(x, x_back, weight, bias)
    assert out.shape == ref.shape, (out.shape, ref.shape)
    out32 = out.astype(jnp.float32)
    max_err = float(jnp.max(jnp.abs(out32 - ref)))
    # bf16 operands + bf16 output with f32 accumulation -> loose tolerance vs f32 reference.
    assert jnp.allclose(out32, ref, atol=5e-2, rtol=5e-2), max_err
    print("KERNEL_OK")
</pallas_src>

<mosaic_0001>
module attributes {stable_mosaic.version = 11 : i64} {
  func.func @kernel(%arg0: i32, %arg1: memref<1x16x132xbf16, #tpu.memory_space<vmem>>, %arg2: memref<5x16x16xbf16, #tpu.memory_space<vmem>>, %arg3: memref<16x1xf32, #tpu.memory_space<vmem>>, %arg4: memref<1x16x128xbf16, #tpu.memory_space<vmem>>) attributes {dimension_semantics = [#tpu.dimension_semantics<parallel>], iteration_bounds = array<i64: 2>, scalar_prefetch = 0 : i64, scratch_operands = 0 : i64, tpu.core_type = #tpu.core_type<tc>, window_params = [{transform_indices = @transform_0, window_bounds = array<i64: 1, 16, 132>}, {pipeline_mode = #tpu.pipeline_mode<synchronous>, transform_indices = @transform_1, window_bounds = array<i64: 5, 16, 16>}, {pipeline_mode = #tpu.pipeline_mode<synchronous>, transform_indices = @transform_2, window_bounds = array<i64: 16, 1>}, {transform_indices = @transform_3, window_bounds = array<i64: 1, 16, 128>}]} {
    %c0 = arith.constant 0 : index
    %c0_0 = arith.constant 0 : index
    %0 = vector.load %arg3[%c0, %c0_0] : memref<16x1xf32, #tpu.memory_space<vmem>>, vector<16x1xf32>
    %c0_1 = arith.constant 0 : index
    %c0_2 = arith.constant 0 : index
    %c0_3 = arith.constant 0 : index
    %1 = vector.load %arg2[%c0_1, %c0_2, %c0_3] : memref<5x16x16xbf16, #tpu.memory_space<vmem>>, vector<1x16x16xbf16>
    %2 = vector.shape_cast %1 : vector<1x16x16xbf16> to vector<16x16xbf16>
    %c1 = arith.constant 1 : index
    %c0_4 = arith.constant 0 : index
    %c0_5 = arith.constant 0 : index
    %3 = vector.load %arg2[%c1, %c0_4, %c0_5] : memref<5x16x16xbf16, #tpu.memory_space<vmem>>, vector<1x16x16xbf16>
    %4 = vector.shape_cast %3 : vector<1x16x16xbf16> to vector<16x16xbf16>
    %c2 = arith.constant 2 : index
    %c0_6 = arith.constant 0 : index
    %c0_7 = arith.constant 0 : index
    %5 = vector.load %arg2[%c2, %c0_6, %c0_7] : memref<5x16x16xbf16, #tpu.memory_space<vmem>>, vector<1x16x16xbf16>
    %6 = vector.shape_cast %5 : vector<1x16x16xbf16> to vector<16x16xbf16>
    %c3 = arith.constant 3 : index
    %c0_8 = arith.constant 0 : index
    %c0_9 = arith.constant 0 : index
    %7 = vector.load %arg2[%c3, %c0_8, %c0_9] : memref<5x16x16xbf16, #tpu.memory_space<vmem>>, vector<1x16x16xbf16>
    %8 = vector.shape_cast %7 : vector<1x16x16xbf16> to vector<16x16xbf16>
    %c4 = arith.constant 4 : index
    %c0_10 = arith.constant 0 : index
    %c0_11 = arith.constant 0 : index
    %9 = vector.load %arg2[%c4, %c0_10, %c0_11] : memref<5x16x16xbf16, #tpu.memory_space<vmem>>, vector<1x16x16xbf16>
    %10 = vector.shape_cast %9 : vector<1x16x16xbf16> to vector<16x16xbf16>
    %c0_i32 = arith.constant 0 : i32
    %11 = arith.index_cast %c0_i32 : i32 to index
    %c0_12 = arith.constant 0 : index
    %c0_13 = arith.constant 0 : index
    %12 = vector.load %arg1[%11, %c0_12, %c0_13] : memref<1x16x132xbf16, #tpu.memory_space<vmem>>, vector<1x16x132xbf16>
    %13 = vector.shape_cast %12 : vector<1x16x132xbf16> to vector<16x132xbf16>
    %14 = vector.extract_strided_slice %13 {offsets = [0, 0], sizes = [16, 128], strides = [1, 1]} : vector<16x132xbf16> to vector<16x128xbf16>
    %cst = arith.constant dense<0.000000e+00> : vector<16x128xf32>
    %15 = tpu.matmul %2, %14, %cst {dimension_numbers = #tpu.dot_dimension_numbers<[1], [0], [0], [1], [0, 0, 1, 1], [], []>} : vector<16x16xbf16>, vector<16x128xbf16>, vector<16x128xf32> -> vector<16x128xf32>
    %16 = vector.extract_strided_slice %13 {offsets = [0, 1], sizes = [16, 128], strides = [1, 1]} : vector<16x132xbf16> to vector<16x128xbf16>
    %cst_14 = arith.constant dense<0.000000e+00> : vector<16x128xf32>
    %17 = tpu.matmul %4, %16, %cst_14 {dimension_numbers = #tpu.dot_dimension_numbers<[1], [0], [0], [1], [0, 0, 1, 1], [], []>} : vector<16x16xbf16>, vector<16x128xbf16>, vector<16x128xf32> -> vector<16x128xf32>
    %18 = arith.addf %15, %17 : vector<16x128xf32>
    %19 = vector.extract_strided_slice %13 {offsets = [0, 2], sizes = [16, 128], strides = [1, 1]} : vector<16x132xbf16> to vector<16x128xbf16>
    %cst_15 = arith.constant dense<0.000000e+00> : vector<16x128xf32>
    %20 = tpu.matmul %6, %19, %cst_15 {dimension_numbers = #tpu.dot_dimension_numbers<[1], [0], [0], [1], [0, 0, 1, 1], [], []>} : vector<16x16xbf16>, vector<16x128xbf16>, vector<16x128xf32> -> vector<16x128xf32>
    %21 = arith.addf %18, %20 : vector<16x128xf32>
    %22 = vector.extract_strided_slice %13 {offsets = [0, 3], sizes = [16, 128], strides = [1, 1]} : vector<16x132xbf16> to vector<16x128xbf16>
    %cst_16 = arith.constant dense<0.000000e+00> : vector<16x128xf32>
    %23 = tpu.matmul %8, %22, %cst_16 {dimension_numbers = #tpu.dot_dimension_numbers<[1], [0], [0], [1], [0, 0, 1, 1], [], []>} : vector<16x16xbf16>, vector<16x128xbf16>, vector<16x128xf32> -> vector<16x128xf32>
    %24 = arith.addf %21, %23 : vector<16x128xf32>
    %25 = vector.extract_strided_slice %13 {offsets = [0, 4], sizes = [16, 128], strides = [1, 1]} : vector<16x132xbf16> to vector<16x128xbf16>
    %cst_17 = arith.constant dense<0.000000e+00> : vector<16x128xf32>
    %26 = tpu.matmul %10, %25, %cst_17 {dimension_numbers = #tpu.dot_dimension_numbers<[1], [0], [0], [1], [0, 0, 1, 1], [], []>} : vector<16x16xbf16>, vector<16x128xbf16>, vector<16x128xf32> -> vector<16x128xf32>
    %27 = arith.addf %24, %26 : vector<16x128xf32>
    %28 = vector.broadcast %0 : vector<16x1xf32> to vector<16x128xf32>
    %29 = arith.addf %27, %28 : vector<16x128xf32>
    %cst_18 = arith.constant 0.000000e+00 : f32
    %30 = vector.broadcast %cst_18 : f32 to vector<16x128xf32>
    %31 = arith.cmpf oge, %29, %30 : vector<16x128xf32>
    %cst_19 = arith.constant 0.00999999977 : f32
    %32 = vector.broadcast %cst_19 : f32 to vector<16x128xf32>
    %33 = arith.mulf %32, %29 : vector<16x128xf32>
    %34 = arith.select %31, %29, %33 : vector<16x128xi1>, vector<16x128xf32>
    %35 = arith.truncf %34 : vector<16x128xf32> to vector<16x128xbf16>
    %36 = arith.index_cast %c0_i32 : i32 to index
    %c0_20 = arith.constant 0 : index
    %c0_21 = arith.constant 0 : index
    %37 = vector.load %arg4[%36, %c0_20, %c0_21] : memref<1x16x128xbf16, #tpu.memory_space<vmem>>, vector<1x16x128xbf16>
    %38 = vector.shape_cast %37 : vector<1x16x128xbf16> to vector<16x128xbf16>
    %39 = vector.shape_cast %35 : vector<16x128xbf16> to vector<1x16x128xbf16>
    tpu.vector_store %arg4[%36, %c0_20, %c0_21], %39 {strides = array<i32>} : memref<1x16x128xbf16, #tpu.memory_space<vmem>>, vector<1x16x128xbf16>,
    %c1_i32 = arith.constant 1 : i32
    return
  }
  func.func @transform_0(%arg0: i32) -> (i32, i32, i32) {
    %c0_i32 = arith.constant 0 : i32
    %c0_i32_0 = arith.constant 0 : i32
    %c0_i32_1 = arith.constant 0 : i32
    return %arg0, %c0_i32, %c0_i32_0 : i32, i32, i32
  }
  func.func @transform_1(%arg0: i32) -> (i32, i32, i32) {
    %c0_i32 = arith.constant 0 : i32
    %c0_i32_0 = arith.constant 0 : i32
    %c0_i32_1 = arith.constant 0 : i32
    %c0_i32_2 = arith.constant 0 : i32
    return %c0_i32, %c0_i32_0, %c0_i32_1 : i32, i32, i32
  }
  func.func @transform_2(%arg0: i32) -> (i32, i32) {
    %c0_i32 = arith.constant 0 : i32
    %c0_i32_0 = arith.constant 0 : i32
    %c0_i32_1 = arith.constant 0 : i32
    return %c0_i32, %c0_i32_0 : i32, i32
  }
  func.func @transform_3(%arg0: i32) -> (i32, i32, i32) {
    %c0_i32 = arith.constant 0 : i32
    %c0_i32_0 = arith.constant 0 : i32
    %c0_i32_1 = arith.constant 0 : i32
    return %arg0, %c0_i32, %c0_i32_0 : i32, i32, i32
  }
}

</mosaic_0001>

<llo_original>
// kernel: tpu_custom_call.1
$region0: #{tpu_custom_call.1}
  #allocation0 [shape = 'u32[]', space=smem, size = 0x4, offset = 0x4, fixed_abs, tag = 'smem constant byte address 0x4 - core index']
  #allocation1 [shape = 'u32[144,128]{1,0:T(1,128)}', space=vmem, size = 0x12000, scoped, tag = 'internal scratch']
  %s0 = inlined_call_operand.hbm [shape: bf16[2,16,132], index: 0, kind: input, shape index: {}]
  %s1 = inlined_call_operand.hbm [shape: bf16[5,16,16], index: 1, kind: input, shape index: {}]
  %s2 = inlined_call_operand.vmem [shape: f32[16,1], index: 2, kind: input, shape index: {}]
  %s3 = inlined_call_operand.hbm [shape: bf16[2,16,128], index: 3, kind: output, shape index: {}]
  %s4 = sld [smem:[#allocation0]]
  $region53: #{tpu_custom_call.1} parent=0
    _
  %s6 = ssub.s32 1, %s4
  %s7 = scalar_select 0, %s6, %s4
  $region1: #{tpu_custom_call.1} parent=0
    #allocation2 [shape = 'u8[16384]{0}', space=vmem, size = 0x4000, scoped, tag = 'input window, operand 0']
    #allocation3 [shape = 's32[2]{0}', space=sflag, size = 0x8, scoped, tag = 'scoped memory for tpu_custom_call.1']
    #allocation4 [shape = 's32[2]{0}', space=sflag, size = 0x8, scoped, tag = 'scoped memory for tpu_custom_call.1']
    #allocation5 [shape = 'u8[20480]{0}', space=vmem, size = 0x5000, scoped, tag = 'input window, operand 1, single buffered']
    #allocation6 [shape = 's32[1]{0}', space=sflag, size = 0x4, scoped, tag = 'scoped memory for tpu_custom_call.1']
    #allocation7 [shape = 'u8[8192]{0}', space=vmem, size = 0x2000, scoped, tag = 'output window, operand 0']
    %8 = vsyncpa [#allocation3], 0
    %s9 = scalar_lea.sflag [#allocation3], 1
    %10 = vsyncpa %s9, 0
    %11 = vsyncpa [#allocation6], 0
    %12 = vsyncpa [#allocation4], 0
    %s13 = scalar_lea.sflag [#allocation4], 1
    %14 = vsyncpa %s13, 0
    loop: start=0, step=1, limit=4
    $region2: #{tpu_custom_call.1} parent=1 // loop_pre_header
      _
    $region3: #{tpu_custom_call.1} parent=1 // loop_header
      %s16 = sphi 0, %s20
      %p17 = scmp.ge.s32.totalorder %s16, 4
      %s26 = sphi 0, %s28
      %s29 = sphi 0, %s26
      %s30 = sphi 0, %s29
      %s46 = sphi 0, %s30
      %s50 = sphi 0, %s50
      %s52 = sphi 0, %s50
      %s53 = sphi 0, %s52
      %s67 = sphi 0, %s53
      %s71 = sphi 0, %s71
      %s73 = sphi 0, %s71
      %s74 = sphi 0, %s73
      %s88 = sphi 0, %s74
      %s94 = sphi 0, %s96
      %s97 = sphi 0, %s94
      %s98 = sphi 0, %s97
      %s114 = sphi 0, %s98
    $region4: #{tpu_custom_call.1} parent=1 // loop_header_branch
      %19 = sbr.rel (%p17) target = $region8
    $region5: #{tpu_custom_call.1} parent=1 // loop_body
      %s21 = ssub.s32 %s16, 1
      %s22 = ssub.s32 %s16, 2
      %s23 = sadd.s32 %s16, 1
      %s24 = ssub.s32 %s16, %s23
      %p25 = scmp.eq.s32.totalorder %s24, 0
      %s27 = sadd.s32 %s26, 1
      %s28 = scalar_select %p25, %s26, %s27
      %p31 = pneg %p25
      %p32 = scmp.eq.s32.totalorder %s16, 1
      %p33 = por %p31, %p32
      %p34 = scmp.ne.s32.totalorder %s26, %s29
      %p35 = scmp.eq.s32.totalorder %s16, 0
      %p36 = por %p34, %p35
      %p37 = scmp.ne.s32.totalorder %s26, %s29
      %p38 = scmp.eq.s32.totalorder %s21, 1
      %p39 = por %p37, %p38
      %p40 = scmp.ne.s32.totalorder %s29, %s30
      %p41 = scmp.eq.s32.totalorder %s21, 0
      %p42 = por %p40, %p41
      %p43 = scmp.ne.s32.totalorder %s29, %s30
      %p44 = scmp.eq.s32.totalorder %s22, 1
      %p45 = por %p43, %p44
      %p47 = scmp.ne.s32.totalorder %s30, %s46
      %p48 = scmp.eq.s32.totalorder %s22, 0
      %p49 = por %p47, %p48
      %s51 = sadd.s32 %s50, 1
      %p54 = scmp.eq.s32.totalorder %s16, 1
      %p55 = scmp.ne.s32.totalorder %s50, %s52
      %p56 = scmp.eq.s32.totalorder %s16, 0
      %p57 = por %p55, %p56
      %p58 = scmp.ne.s32.totalorder %s50, %s52
      %p59 = scmp.eq.s32.totalorder %s21, 1
      %p60 = por %p58, %p59
      %p61 = scmp.ne.s32.totalorder %s52, %s53
      %p62 = scmp.eq.s32.totalorder %s21, 0
      %p63 = por %p61, %p62
      %p64 = scmp.ne.s32.totalorder %s52, %s53
      %p65 = scmp.eq.s32.totalorder %s22, 1
      %p66 = por %p64, %p65
      %p68 = scmp.ne.s32.totalorder %s53, %s67
      %p69 = scmp.eq.s32.totalorder %s22, 0
      %p70 = por %p68, %p69
      %s72 = sadd.s32 %s71, 1
      %p75 = scmp.eq.s32.totalorder %s16, 1
      %p76 = scmp.ne.s32.totalorder %s71, %s73
      %p77 = scmp.eq.s32.totalorder %s16, 0
      %p78 = por %p76, %p77
      %p79 = scmp.ne.s32.totalorder %s71, %s73
      %p80 = scmp.eq.s32.totalorder %s21, 1
      %p81 = por %p79, %p80
      %p82 = scmp.ne.s32.totalorder %s73, %s74
      %p83 = scmp.eq.s32.totalorder %s21, 0
      %p84 = por %p82, %p83
      %p85 = scmp.ne.s32.totalorder %s73, %s74
      %p86 = scmp.eq.s32.totalorder %s22, 1
      %p87 = por %p85, %p86
      %p89 = scmp.ne.s32.totalorder %s74, %s88
      %p90 = scmp.eq.s32.totalorder %s22, 0
      %p91 = por %p89, %p90
      %s92 = ssub.s32 %s16, %s23
      %p93 = scmp.eq.s32.totalorder %s92, 0
      %s95 = sadd.s32 %s94, 1
      %s96 = scalar_select %p93, %s94, %s95
      %p99 = pneg %p93
      %p100 = scmp.eq.s32.totalorder %s16, 1
      %p101 = por %p99, %p100
      %p102 = scmp.ne.s32.totalorder %s94, %s97
      %p103 = scmp.eq.s32.totalorder %s16, 0
      %p104 = por %p102, %p103
      %p105 = scmp.ne.s32.totalorder %s94, %s97
      %p106 = scmp.eq.s32.totalorder %s21, 1
      %p107 = por %p105, %p106
      %p108 = scmp.ne.s32.totalorder %s97, %s98
      %p109 = scmp.eq.s32.totalorder %s21, 0
      %p110 = por %p108, %p109
      %p111 = scmp.ne.s32.totalorder %s97, %s98
      %p112 = scmp.eq.s32.totalorder %s22, 1
      %p113 = por %p111, %p112
      %p115 = scmp.ne.s32.totalorder %s98, %s114
      %p116 = scmp.eq.s32.totalorder %s22, 0
      %p117 = por %p115, %p116
      %p118 = scmp.le.s32.totalorder 1, %s16
      %p119 = scmp.lt.s32.totalorder %s16, 3
      %p120 = pnand %p118, %p119
      %p121 = pneg %p120
      // Predicated region
      $region9: #{tpu_custom_call.1} parent=5 // pred_check
        _
      $region10: #{tpu_custom_call.1} parent=5 // pred_check_branch
        %123 = sbr.rel (%p120) target = $region12
      $region11: #{tpu_custom_call.1} parent=5 // pred_region
        %s124 = ssub.s32 %s16, 1
        // Predicated region
        $region13: #{tpu_custom_call.1} parent=11 // pred_check
          %p125 = pneg %p63
        $region14: #{tpu_custom_call.1} parent=11 // pred_check_branch
          %127 = sbr.rel (%p125) target = $region16
        $region15: #{tpu_custom_call.1} parent=11 // pred_region
          %s129 = ssub.s32 640, 640
          %130 = vsyncadd [#allocation6], %s129
          %s131 = sshll.u32 [#allocation5], 4
          %s132 = int_to_ptr.vmem [resolvable:$true] %s131
          %137 = dma.hbm_to_vmem [thread:$0]  %s1, 640, %s132, [#allocation6], 64, 64, 4
        $region16: #{tpu_custom_call.1} parent=11 // pred_fallthru
          _
        // Predicated region
        $region17: #{tpu_custom_call.1} parent=11 // pred_check
          %p138 = pneg %p84
        $region18: #{tpu_custom_call.1} parent=11 // pred_check_branch
          %140 = sbr.rel (%p138) target = $region20
        $region19: #{tpu_custom_call.1} parent=11 // pred_region
          _
        $region20: #{tpu_custom_call.1} parent=11 // pred_fallthru
          _
      $region12: #{tpu_custom_call.1} parent=5 // pred_fallthru
        _
      %p141 = scmp.lt.s32.totalorder %s16, 2
      // Predicated region
      $region21: #{tpu_custom_call.1} parent=5 // pred_check
        %p142 = pneg %p141
      $region22: #{tpu_custom_call.1} parent=5 // pred_check_branch
        %144 = sbr.rel (%p142) target = $region24
      $region23: #{tpu_custom_call.1} parent=5 // pred_region
        // Predicated region
        $region25: #{tpu_custom_call.1} parent=23 // pred_check
          %p145 = pneg %p36
        $region26: #{tpu_custom_call.1} parent=23 // pred_check_branch
          %147 = sbr.rel (%p145) target = $region28
        $region27: #{tpu_custom_call.1} parent=23 // pred_region
          %s148 = sand.u32 %s26, 1
          %s149 = scalar_lea.sflag [#allocation3], %s148
          %s150 = sand.u32 %s26, 1
          %s151 = smul.addr %s150, 16
          %s152 = scalar_lea.vmem [#allocation2], %s151
          %s154 = ssub.s32 256, 256
          %155 = vsyncadd %s149, %s154
          %s156 = smul.addr %s16, 4
          %s157 = smul.addr %s156, 64
          %s158 = scalar_lea.hbm %s0, %s157
          %s159 = sshll.u32 %s152, 4
          %s160 = int_to_ptr.vmem [resolvable:$true] %s159
          %165 = dma.hbm_to_vmem [thread:$0]  %s158, 256, %s160, %s149, 128, 128, 8
        $region28: #{tpu_custom_call.1} parent=23 // pred_fallthru
          _
      $region24: #{tpu_custom_call.1} parent=5 // pred_fallthru
        _
      %p166 = scmp.le.s32.totalorder 1, %s16
      %p167 = scmp.lt.s32.totalorder %s16, 3
      %p168 = pnand %p166, %p167
      %p169 = pneg %p168
      // Predicated region
      $region29: #{tpu_custom_call.1} parent=5 // pred_check
        _
      $region30: #{tpu_custom_call.1} parent=5 // pred_check_branch
        %171 = sbr.rel (%p168) target = $region32
      $region31: #{tpu_custom_call.1} parent=5 // pred_region
        %s172 = ssub.s32 %s16, 1
        %s173 = sand.u32 %s29, 1
        %s174 = scalar_lea.sflag [#allocation3], %s173
        %s175 = sand.u32 %s29, 1
        %s176 = smul.addr %s175, 16
        %s177 = scalar_lea.vmem [#allocation2], %s176
        // Predicated region
        $region33: #{tpu_custom_call.1} parent=31 // pred_check
          %p178 = pneg %p42
        $region34: #{tpu_custom_call.1} parent=31 // pred_check_branch
          %180 = sbr.rel (%p178) target = $region36
        $region35: #{tpu_custom_call.1} parent=31 // pred_region
          %181 = dma.done %s174, 256
        $region36: #{tpu_custom_call.1} parent=31 // pred_fallthru
          _
        // Predicated region
        $region37: #{tpu_custom_call.1} parent=31 // pred_check
          %p182 = pneg %p63
        $region38: #{tpu_custom_call.1} parent=31 // pred_check_branch
          %184 = sbr.rel (%p182) target = $region40
        $region39: #{tpu_custom_call.1} parent=31 // pred_region
          %185 = dma.done [#allocation6], 640
        $region40: #{tpu_custom_call.1} parent=31 // pred_fallthru
          _
        %s186 = sand.u32 %s29, 1
        %s187 = scalar_lea.sflag [#allocation3], %s186
        %s188 = sand.u32 %s29, 1
        %s189 = smul.addr %s188, 16
        %s190 = scalar_lea.vmem [#allocation2], %s189
        %p191 = pneg %p42
        %p192 = pneg %p39
        %p193 = pneg %p63
        %p194 = pneg %p60
        %p195 = pneg %p84
        %p196 = pneg %p81
        %p197 = pneg %p110
        %p198 = pneg %p107
        %s199 = sand.u32 %s97, 1
        %s200 = scalar_lea.sflag [#allocation4], %s199
        %s201 = sand.u32 %s97, 1
        %s202 = smul.addr %s201, 8
        %s203 = scalar_lea.vmem [#allocation7], %s202
        %v205 = vld [vmem:[%s2] sm:$0xff]
        %v206 = vld [vmem:[%s2 + $0x8] sm:$0xff]
        %v207 = vld [vmem:[#allocation5] sm:$0xf]
        %v208 = vld [vmem:[#allocation5 + $0x4] sm:$0xf]
        %s209 = scalar_lea.vmem [#allocation5], 8
        %v210 = vld [vmem:[%s209] sm:$0xf]
        %v211 = vld [vmem:[%s209 + $0x4] sm:$0xf]
        %s212 = scalar_lea.vmem [#allocation5], 16
        %v213 = vld [vmem:[%s212] sm:$0xf]
        %v214 = vld [vmem:[%s212 + $0x4] sm:$0xf]
        %s215 = scalar_lea.vmem [#allocation5], 24
        %v216 = vld [vmem:[%s215] sm:$0xf]
        %v217 = vld [vmem:[%s215 + $0x4] sm:$0xf]
        %s218 = scalar_lea.vmem [#allocation5], 32
        %v219 = vld [vmem:[%s218] sm:$0xf]
        %v220 = vld [vmem:[%s218 + $0x4] sm:$0xf]
        %v221 = vld [vmem:[%s177] sm:$0xff]
        %v222 = vld [vmem:[%s177 + $0x8] sm:$0xff]
        %v225 = vunpack.c.l.b16 %v210
        %v226 = vunpack.c.l.b16 %v211
        %v227 = vpack.c.b16 %v226, %v225
        %v230 = vunpack.c.l.b16 %v221
        %v231 = vunpack.c.h.b16 %v221
        %v232 = vunpack.c.l.b16 %v222
        %v233 = vunpack.c.h.b16 %v222
        %v234 = vpack.c.b16 %v232, %v230
        %v235 = vpack.c.b16 %v233, %v231
        %236 = vrot.lane.b32.xlu0 %v234, 127
        %v237 = vpop.permute.xlu0 %236
        %238 = vrot.lane.b32.xlu0 %v235, 127
        %v239 = vpop.permute.xlu0 %238
        %vm240 = vcmask 1039360
        %v241 = vsel %vm240, %v237, %v239
        %vm243 = vcmask 130048
        %v245 = vsel %vm243, %v227, 0
        %247 = vmatprep.subr.bf16.mxu0 0
        %248 = vmatpush1.bf16.msra.mxu0 0
        %249 = vmatprep.subr.bf16.mxu0 0
        %250 = vmatpush1.bf16.msra.mxu0 0
        %251 = vmatprep.subr.bf16.mxu0 0
        %252 = vmatpush1.bf16.msra.mxu0 0
        %253 = vmatprep.subr.bf16.mxu0 0
        %254 = vmatpush1.bf16.msra.mxu0 0
        %255 = vmatprep.subr.bf16.mxu0 0
        %256 = vmatpush1.bf16.msra.mxu0 0
        %257 = vmatprep.subr.bf16.mxu0 0
        %258 = vmatpush1.bf16.msra.mxu0 0
        %259 = vmatprep.subr.bf16.mxu0 0
        %260 = vmatpush1.bf16.msra.mxu0 0
        %261 = vmatprep.subr.bf16.mxu0 0
        %262 = vmatpush1.bf16.msra.mxu0 %v241
        %263 = vmatprep.subr.bf16.mxu0 0
        %264 = vmatpush2.bf16.msra.mxu0 0
        %265 = vmatprep.subr.bf16.mxu0 0
        %266 = vmatpush2.bf16.msra.mxu0 0
        %267 = vmatprep.subr.bf16.mxu0 0
        %268 = vmatpush2.bf16.msra.mxu0 0
        %269 = vmatprep.subr.bf16.mxu0 0
        %270 = vmatpush2.bf16.msra.mxu0 0
        %271 = vmatprep.subr.bf16.mxu0 0
        %272 = vmatpush2.bf16.msra.mxu0 0
        %273 = vmatprep.subr.bf16.mxu0 0
        %274 = vmatpush2.bf16.msra.mxu0 0
        %275 = vmatprep.subr.bf16.mxu0 0
        %276 = vmatpush2.bf16.msra.mxu0 0
        %277 = vmatprep.subr.bf16.mxu0 0
        %278 = vmatpush2.bf16.msra.mxu0 0
        %279 = vmatprep.mubr.bf16.mxu0 0
        %280 = vmatmul.mubr.bf16.gmra.mxu0 %v245
        %v281 = vpop.f32.mrf.mxu0
        %v282 = vadd.f32 0.0, %v281
        %v283 = vpop.f32.mrf.mxu0
        %v284 = vpop.f32.mrf.mxu0
        %v285 = vadd.f32 0.0, %v284
        %v286 = vpop.f32.mrf.mxu0
        %287 = vdwg.mxu0
        %v290 = vunpack.c.l.b16 %v207
        %v291 = vunpack.c.l.b16 %v208
        %v292 = vpack.c.b16 %v291, %v290
        %v295 = vsel %vm243, %v292, 0
        %297 = vmatprep.subr.bf16.mxu0 0
        %298 = vmatpush1.bf16.msra.mxu0 0
        %299 = vmatprep.subr.bf16.mxu0 0
        %300 = vmatpush1.bf16.msra.mxu0 0
        %301 = vmatprep.subr.bf16.mxu0 0
        %302 = vmatpush1.bf16.msra.mxu0 0
        %303 = vmatprep.subr.bf16.mxu0 0
        %304 = vmatpush1.bf16.msra.mxu0 0
        %305 = vmatprep.subr.bf16.mxu0 0
        %306 = vmatpush1.bf16.msra.mxu0 0
        %307 = vmatprep.subr.bf16.mxu0 0
        %308 = vmatpush1.bf16.msra.mxu0 0
        %309 = vmatprep.subr.bf16.mxu0 0
        %310 = vmatpush1.bf16.msra.mxu0 0
        %311 = vmatprep.subr.bf16.mxu0 0
        %312 = vmatpush1.bf16.msra.mxu0 %v234
        %313 = vmatprep.subr.bf16.mxu0 0
        %314 = vmatpush2.bf16.msra.mxu0 0
        %315 = vmatprep.subr.bf16.mxu0 0
        %316 = vmatpush2.bf16.msra.mxu0 0
        %317 = vmatprep.subr.bf16.mxu0 0
        %318 = vmatpush2.bf16.msra.mxu0 0
        %319 = vmatprep.subr.bf16.mxu0 0
        %320 = vmatpush2.bf16.msra.mxu0 0
        %321 = vmatprep.subr.bf16.mxu0 0
        %322 = vmatpush2.bf16.msra.mxu0 0
        %323 = vmatprep.subr.bf16.mxu0 0
        %324 = vmatpush2.bf16.msra.mxu0 0
        %325 = vmatprep.subr.bf16.mxu0 0
        %326 = vmatpush2.bf16.msra.mxu0 0
        %327 = vmatprep.subr.bf16.mxu0 0
        %328 = vmatpush2.bf16.msra.mxu0 0
        %329 = vmatprep.mubr.bf16.mxu0 0
        %330 = vmatmul.mubr.bf16.gmra.mxu0 %v295
        %v331 = vpop.f32.mrf.mxu0
        %v332 = vadd.f32 %v282, %v331
        %v333 = vpop.f32.mrf.mxu0
        %v334 = vpop.f32.mrf.mxu0
        %v335 = vadd.f32 %v285, %v334
        %v336 = vpop.f32.mrf.mxu0
        %337 = vdwg.mxu0
        %v340 = vunpack.c.l.b16 %v213
        %v341 = vunpack.c.l.b16 %v214
        %v342 = vpack.c.b16 %v341, %v340
        %343 = vrot.lane.b32.xlu0 %v234, 126
        %v344 = vpop.permute.xlu0 %343
        %345 = vrot.lane.b32.xlu0 %v235, 126
        %v346 = vpop.permute.xlu0 %345
        %vm347 = vcmask 1031168
        %v348 = vsel %vm347, %v344, %v346
        %v351 = vsel %vm243, %v342, 0
        %353 = vmatprep.subr.bf16.mxu0 0
        %354 = vmatpush1.bf16.msra.mxu0 0
        %355 = vmatprep.subr.bf16.mxu0 0
        %356 = vmatpush1.bf16.msra.mxu0 0
        %357 = vmatprep.subr.bf16.mxu0 0
        %358 = vmatpush1.bf16.msra.mxu0 0
        %359 = vmatprep.subr.bf16.mxu0 0
        %360 = vmatpush1.bf16.msra.mxu0 0
        %361 = vmatprep.subr.bf16.mxu0 0
        %362 = vmatpush1.bf16.msra.mxu0 0
        %363 = vmatprep.subr.bf16.mxu0 0
        %364 = vmatpush1.bf16.msra.mxu0 0
        %365 = vmatprep.subr.bf16.mxu0 0
        %366 = vmatpush1.bf16.msra.mxu0 0
        %367 = vmatprep.subr.bf16.mxu0 0
        %368 = vmatpush1.bf16.msra.mxu0 %v348
        %369 = vmatprep.subr.bf16.mxu0 0
        %370 = vmatpush2.bf16.msra.mxu0 0
        %371 = vmatprep.subr.bf16.mxu0 0
        %372 = vmatpush2.bf16.msra.mxu0 0
        %373 = vmatprep.subr.bf16.mxu0 0
        %374 = vmatpush2.bf16.msra.mxu0 0
        %375 = vmatprep.subr.bf16.mxu0 0
        %376 = vmatpush2.bf16.msra.mxu0 0
        %377 = vmatprep.subr.bf16.mxu0 0
        %378 = vmatpush2.bf16.msra.mxu0 0
        %379 = vmatprep.subr.bf16.mxu0 0
        %380 = vmatpush2.bf16.msra.mxu0 0
        %381 = vmatprep.subr.bf16.mxu0 0
        %382 = vmatpush2.bf16.msra.mxu0 0
        %383 = vmatprep.subr.bf16.mxu0 0
        %384 = vmatpush2.bf16.msra.mxu0 0
        %385 = vmatprep.mubr.bf16.mxu0 0
        %386 = vmatmul.mubr.bf16.gmra.mxu0 %v351
        %v387 = vpop.f32.mrf.mxu0
        %v388 = vadd.f32 0.0, %v387
        %v389 = vpop.f32.mrf.mxu0
        %v390 = vpop.f32.mrf.mxu0
        %v391 = vadd.f32 0.0, %v390
        %v392 = vpop.f32.mrf.mxu0
        %393 = vdwg.mxu0
        %v394 = vadd.f32 %v332, %v388
        %v395 = vadd.f32 %v335, %v391
        %v398 = vunpack.c.l.b16 %v216
        %v399 = vunpack.c.l.b16 %v217
        %v400 = vpack.c.b16 %v399, %v398
        %401 = vrot.lane.b32.xlu0 %v234, 125
        %v402 = vpop.permute.xlu0 %401
        %403 = vrot.lane.b32.xlu0 %v235, 125
        %v404 = vpop.permute.xlu0 %403
        %vm405 = vcmask 1022976
        %v406 = vsel %vm405, %v402, %v404
        %v409 = vsel %vm243, %v400, 0
        %411 = vmatprep.subr.bf16.mxu0 0
        %412 = vmatpush1.bf16.msra.mxu0 0
        %413 = vmatprep.subr.bf16.mxu0 0
        %414 = vmatpush1.bf16.msra.mxu0 0
        %415 = vmatprep.subr.bf16.mxu0 0
        %416 = vmatpush1.bf16.msra.mxu0 0
        %417 = vmatprep.subr.bf16.mxu0 0
        %418 = vmatpush1.bf16.msra.mxu0 0
        %419 = vmatprep.subr.bf16.mxu0 0
        %420 = vmatpush1.bf16.msra.mxu0 0
        %421 = vmatprep.subr.bf16.mxu0 0
        %422 = vmatpush1.bf16.msra.mxu0 0
        %423 = vmatprep.subr.bf16.mxu0 0
        %424 = vmatpush1.bf16.msra.mxu0 0
        %425 = vmatprep.subr.bf16.mxu0 0
        %426 = vmatpush1.bf16.msra.mxu0 %v406
        %427 = vmatprep.subr.bf16.mxu0 0
        %428 = vmatpush2.bf16.msra.mxu0 0
        %429 = vmatprep.subr.bf16.mxu0 0
        %430 = vmatpush2.bf16.msra.mxu0 0
        %431 = vmatprep.subr.bf16.mxu0 0
        %432 = vmatpush2.bf16.msra.mxu0 0
        %433 = vmatprep.subr.bf16.mxu0 0
        %434 = vmatpush2.bf16.msra.mxu0 0
        %435 = vmatprep.subr.bf16.mxu0 0
        %436 = vmatpush2.bf16.msra.mxu0 0
        %437 = vmatprep.subr.bf16.mxu0 0
        %438 = vmatpush2.bf16.msra.mxu0 0
        %439 = vmatprep.subr.bf16.mxu0 0
        %440 = vmatpush2.bf16.msra.mxu0 0
        %441 = vmatprep.subr.bf16.mxu0 0
        %442 = vmatpush2.bf16.msra.mxu0 0
        %443 = vmatprep.mubr.bf16.mxu0 0
        %444 = vmatmul.mubr.bf16.gmra.mxu0 %v409
        %v445 = vpop.f32.mrf.mxu0
        %v446 = vadd.f32 0.0, %v445
        %v447 = vpop.f32.mrf.mxu0
        %v448 = vpop.f32.mrf.mxu0
        %v449 = vadd.f32 0.0, %v448
        %v450 = vpop.f32.mrf.mxu0
        %451 = vdwg.mxu0
        %v452 = vadd.f32 %v394, %v446
        %v453 = vadd.f32 %v395, %v449
        %v456 = vunpack.c.l.b16 %v219
        %v457 = vunpack.c.l.b16 %v220
        %v458 = vpack.c.b16 %v457, %v456
        %459 = vrot.lane.b32.xlu0 %v234, 124
        %v460 = vpop.permute.xlu0 %459
        %461 = vrot.lane.b32.xlu0 %v235, 124
        %v462 = vpop.permute.xlu0 %461
        %vm463 = vcmask 1014784
        %v464 = vsel %vm463, %v460, %v462
        %v467 = vsel %vm243, %v458, 0
        %469 = vmatprep.subr.bf16.mxu0 0
        %470 = vmatpush1.bf16.msra.mxu0 0
        %471 = vmatprep.subr.bf16.mxu0 0
        %472 = vmatpush1.bf16.msra.mxu0 0
        %473 = vmatprep.subr.bf16.mxu0 0
        %474 = vmatpush1.bf16.msra.mxu0 0
        %475 = vmatprep.subr.bf16.mxu0 0
        %476 = vmatpush1.bf16.msra.mxu0 0
        %477 = vmatprep.subr.bf16.mxu0 0
        %478 = vmatpush1.bf16.msra.mxu0 0
        %479 = vmatprep.subr.bf16.mxu0 0
        %480 = vmatpush1.bf16.msra.mxu0 0
        %481 = vmatprep.subr.bf16.mxu0 0
        %482 = vmatpush1.bf16.msra.mxu0 0
        %483 = vmatprep.subr.bf16.mxu0 0
        %484 = vmatpush1.bf16.msra.mxu0 %v464
        %485 = vmatprep.subr.bf16.mxu0 0
        %486 = vmatpush2.bf16.msra.mxu0 0
        %487 = vmatprep.subr.bf16.mxu0 0
        %488 = vmatpush2.bf16.msra.mxu0 0
        %489 = vmatprep.subr.bf16.mxu0 0
        %490 = vmatpush2.bf16.msra.mxu0 0
        %491 = vmatprep.subr.bf16.mxu0 0
        %492 = vmatpush2.bf16.msra.mxu0 0
        %493 = vmatprep.subr.bf16.mxu0 0
        %494 = vmatpush2.bf16.msra.mxu0 0
        %495 = vmatprep.subr.bf16.mxu0 0
        %496 = vmatpush2.bf16.msra.mxu0 0
        %497 = vmatprep.subr.bf16.mxu0 0
        %498 = vmatpush2.bf16.msra.mxu0 0
        %499 = vmatprep.subr.bf16.mxu0 0
        %500 = vmatpush2.bf16.msra.mxu0 0
        %501 = vmatprep.mubr.bf16.mxu0 0
        %502 = vmatmul.mubr.bf16.gmra.mxu0 %v467
        %v503 = vpop.f32.mrf.mxu0
        %v504 = vadd.f32 0.0, %v503
        %v505 = vpop.f32.mrf.mxu0
        %v506 = vpop.f32.mrf.mxu0
        %v507 = vadd.f32 0.0, %v506
        %v508 = vpop.f32.mrf.mxu0
        %509 = vdwg.mxu0
        %v510 = vadd.f32 %v452, %v504
        %v511 = vadd.f32 %v453, %v507
        %513 = vset.pattern.permute.xlu0 0
        %514 = vperm.xlu0 %513, %v205
        %v515 = vpop.permute.xlu0 %514
        %518 = vset.pattern.permute.xlu0 0
        %519 = vperm.xlu0 %518, %v206
        %v520 = vpop.permute.xlu0 %519
        %v522 = vadd.f32 %v510, %v515
        %v523 = vadd.f32 %v511, %v520
        %vm524 = vcmp.ge.f32.partialorder %v522, 0.0
        %vm525 = vcmp.ge.f32.partialorder %v523, 0.0
        %v526 = vmul.f32 %v522, 0.01
        %v527 = vmul.f32 %v523, 0.01
        %v528 = vsel %vm524, %v522, %v526
        %v529 = vsel %vm525, %v523, %v527
        %v530 = vpack.c.bf16 %v529, %v528
        %v532 = vunpack.c.l.b16 %v530
        %v533 = vunpack.c.h.b16 %v530
        %v534 = vpack.c.b16 %v532, %v532
        %v535 = vpack.c.b16 %v533, %v533
        %538 = vst [vmem:[%s203] sm:$0xf] %v534
        %539 = vst [vmem:[%s203 + $0x4] sm:$0xf] %v535
        %s540 = sand.u32 %s97, 1
        %s541 = scalar_lea.sflag [#allocation4], %s540
        %s542 = sand.u32 %s97, 1
        %s543 = smul.addr %s542, 8
        %s544 = scalar_lea.vmem [#allocation7], %s543
        // Predicated region
        $region41: #{tpu_custom_call.1} parent=31 // pred_check
          %p545 = pneg %p107
        $region42: #{tpu_custom_call.1} parent=31 // pred_check_branch
          %547 = sbr.rel (%p545) target = $region44
        $region43: #{tpu_custom_call.1} parent=31 // pred_region
          %s549 = ssub.s32 128, 128
          %550 = vsyncadd %s541, %s549
          %s551 = smul.addr %s21, 2
          %s552 = smul.addr %s551, 64
          %s553 = scalar_lea.hbm %s3, %s552
          %s554 = sshll.u32 %s544, 4
          %s555 = int_to_ptr.vmem [resolvable:$true] %s554
          %560 = dma.vmem_to_hbm [thread:$0]  %s555, 128, %s553, %s541, 64, 64, 4
        $region44: #{tpu_custom_call.1} parent=31 // pred_fallthru
          _
      $region32: #{tpu_custom_call.1} parent=5 // pred_fallthru
        _
      %p561 = scmp.le.s32.totalorder 2, %s16
      // Predicated region
      $region45: #{tpu_custom_call.1} parent=5 // pred_check
        %p562 = pneg %p561
      $region46: #{tpu_custom_call.1} parent=5 // pred_check_branch
        %564 = sbr.rel (%p562) target = $region48
      $region47: #{tpu_custom_call.1} parent=5 // pred_region
        %s565 = ssub.s32 %s16, 2
        // Predicated region
        $region49: #{tpu_custom_call.1} parent=47 // pred_check
          %p566 = pneg %p113
        $region50: #{tpu_custom_call.1} parent=47 // pred_check_branch
          %568 = sbr.rel (%p566) target = $region52
        $region51: #{tpu_custom_call.1} parent=47 // pred_region
          %s569 = sand.u32 %s98, 1
          %s570 = scalar_lea.sflag [#allocation4], %s569
          %s571 = sand.u32 %s98, 1
          %s572 = smul.addr %s571, 8
          %s573 = scalar_lea.vmem [#allocation7], %s572
          %574 = dma.done %s570, 128
        $region52: #{tpu_custom_call.1} parent=47 // pred_fallthru
          _
      $region48: #{tpu_custom_call.1} parent=5 // pred_fallthru
        _
    $region6: #{tpu_custom_call.1} parent=1 // loop_footer
      %s20 = sadd.s32 1, %s16
    $region7: #{tpu_custom_call.1} parent=1 // loop_footer_branch
      %15 = sbr.rel target = $region3
    $region8: #{tpu_custom_call.1} parent=1 // loop_exit
      _
    %575 = vsyncpa [#allocation3], 1
    %s576 = scalar_lea.sflag [#allocation3], 1
    %577 = vsyncpa %s576, 1
    %578 = vsyncpa [#allocation6], 1
    %579 = vsyncpa [#allocation4], 1
    %s580 = scalar_lea.sflag [#allocation4], 1
    %581 = vsyncpa %s580, 1

</llo_original>
